<compile_context>
chip_gen: v6e
topology: v6e:2x2x1
jax: 0.10.0
libtpu: 0.0.40
codegen_flags: <defaults>
</compile_context>

<pallas_src>
import functools

import jax
import jax.numpy as jnp
from jax.experimental import pallas as pl
from jax.experimental.pallas import tpu as pltpu

ALPHA = 0.5
SMOOTH = 1.0
LANES = 128
SUBLANES = 8
ALIGN = LANES * SUBLANES  # 1024


def _tile_config():
    """Generation-aware (tile_rows, vmem_limit_bytes)."""
    try:
        kind = jax.devices()[0].device_kind.lower()
    except Exception:
        kind = ""
    if "v7" in kind or "7x" in kind:
        # 4 MiB/f32 input block: 16 MiB double-buffered inputs + <=20 MiB live
        # temporaries fits v7x's 64 MiB physical per-TC VMEM with headroom.
        return 8192, 56 << 20
    if "v6" in kind:
        return 8192, 96 << 20  # 128 MiB physical VMEM; plenty of headroom
    if "v5" in kind:
        return 4096, 64 << 20  # above the 16 MiB scoped default on v5e
    return 4096, 64 << 20      # conservative default (v4 etc.)


def _jaccard_bce_kernel(x_ref, t_ref, out_ref, *, rows, tile_rows, needs_mask):
    x = x_ref[...].astype(jnp.float32)
    t = t_ref[...].astype(jnp.float32)

    # sigmoid(x) == 0.5*tanh(0.5*x) + 0.5 exactly: single EUP tanh, no divide.
    s = 0.5 * jnp.tanh(0.5 * x) + 0.5
    st = s * t
    # BCEWithLogitsLoss on the already-sigmoided s (module quirk):
    #   max(s,0) - s*t + log1p(exp(-|s|)) == s - s*t + log1p(exp(-s)), s in (0,1)
    # Only the softplus term is accumulated here; (s - s*t) is recovered in the
    # epilogue from s_sum/st_sum, so no full-tile `bce` temporary exists.
    sp = jnp.log1p(jnp.exp(-s))

    def red(v):
        # (tile_rows,128) -> (tile_rows//8, 8, 128); axis-0 sum is sublane-
        # aligned VPU vreg adds (no cross-lane work in the hot loop).
        return jnp.sum(v.reshape(-1, SUBLANES, LANES), axis=0)

    def write(sv, tv, stv, spv):
        out_ref[0, 0] = red(sv)
        out_ref[0, 1] = red(tv)
        out_ref[0, 2] = red(stv)
        out_ref[0, 3] = red(spv)

    if not needs_mask:
        # Fully aligned grid: unmasked path everywhere (trace-time decision).
        write(s, t, st, sp)
    else:
        i = pl.program_id(0)
        is_last = i == pl.num_programs(0) - 1

        @pl.when(jnp.logical_not(is_last))
        def _hot():  # interior tiles: unmasked fast path
            write(s, t, st, sp)

        @pl.when(is_last)
        def _tail():
            # The kernel only ever sees a 128-aligned prefix, so only whole
            # rows can be out of range: a row-index mask suffices (and avoids
            # int32 overflow of a flat element index).
            row_idx = jax.lax.broadcasted_iota(jnp.int32, x.shape, 0)
            mask = (i * tile_rows + row_idx) < rows
            zero = jnp.zeros_like(s)
            write(
                jnp.where(mask, s, zero),
                jnp.where(mask, t, zero),
                jnp.where(mask, st, zero),
                jnp.where(mask, sp, zero),
            )


def jaccard_loss_bce(inputs, targets, alpha=ALPHA, smooth=SMOOTH, tile_rows=None):
    """Pallas TPU implementation of JaccardLoss_BCE.forward."""
    x_flat = jnp.ravel(inputs)   # keep HBM dtype; the kernel casts after load
    t_flat = jnp.ravel(targets)
    n = x_flat.shape[0]

    # Aligned prefix goes through the kernel; the <1024-element remainder is
    # folded in by the epilogue -> no jnp.pad full-array copy, ever.
    n_main = (n // ALIGN) * ALIGN

    s_sum = jnp.float32(0.0)
    t_sum = jnp.float32(0.0)
    st_sum = jnp.float32(0.0)
    sp_sum = jnp.float32(0.0)

    if n_main:
        rows = n_main // LANES                       # multiple of 8
        target_rows, vmem_limit = _tile_config()
        if tile_rows is None:
            tile_rows = target_rows
        tile_rows = min(tile_rows, rows)             # still a multiple of 8
        num_blocks = (rows + tile_rows - 1) // tile_rows
        needs_mask = (rows % tile_rows) != 0

        x2 = x_flat[:n_main].reshape(rows, LANES)
        t2 = t_flat[:n_main].reshape(rows, LANES)

        kernel = functools.partial(
            _jaccard_bce_kernel,
            rows=rows, tile_rows=tile_rows, needs_mask=needs_mask,
        )

        partials = pl.pallas_call(
            kernel,
            out_shape=jax.ShapeDtypeStruct(
                (num_blocks, 4, SUBLANES, LANES), jnp.float32),
            grid_spec=pltpu.PrefetchScalarGridSpec(
                num_scalar_prefetch=0,
                grid=(num_blocks,),
                in_specs=[
                    pl.BlockSpec((tile_rows, LANES), lambda i: (i, 0)),
                    pl.BlockSpec((tile_rows, LANES), lambda i: (i, 0)),
                ],
                out_specs=pl.BlockSpec(
                    (1, 4, SUBLANES, LANES), lambda i: (i, 0, 0, 0)),
            ),
            compiler_params=pltpu.CompilerParams(
                # TODO(synk): on v7x, verify via a trace that this 1-D
                # "parallel" grid shards across both TensorCores; if not,
                # switch that generation to pltpu.CORE_PARALLEL.
                dimension_semantics=("parallel",),
                vmem_limit_bytes=vmem_limit,
            ),
        )(x2, t2)

        # Tiny epilogue: the cross-lane reductions happen exactly once.
        sums = jnp.sum(partials, axis=(0, 2, 3))     # (4,)
        s_sum, t_sum, st_sum, sp_sum = sums[0], sums[1], sums[2], sums[3]

    if n_main < n:  # tiny tail (< 1024 elements) handled in plain JAX
        xr = x_flat[n_main:].astype(jnp.float32)
        tr = t_flat[n_main:].astype(jnp.float32)
        sr = jax.nn.sigmoid(xr)
        s_sum = s_sum + jnp.sum(sr)
        t_sum = t_sum + jnp.sum(tr)
        st_sum = st_sum + jnp.sum(sr * tr)
        sp_sum = sp_sum + jnp.sum(jnp.log1p(jnp.exp(-sr)))

    bce = (s_sum - st_sum + sp_sum) / jnp.float32(n)
    jaccard = (st_sum + smooth) / (s_sum + t_sum - st_sum + smooth)
    return alpha * bce + alpha * (1.0 - jaccard)


def jaccard_loss_bce_ref(inputs, targets, alpha=ALPHA, smooth=SMOOTH):
    """Pure-JAX reference matching the PyTorch module exactly."""
    s = jax.nn.sigmoid(jnp.ravel(inputs).astype(jnp.float32))
    t = jnp.ravel(targets).astype(jnp.float32)
    bce_elem = jnp.maximum(s, 0.0) - s * t + jnp.log1p(jnp.exp(-jnp.abs(s)))
    bce = jnp.mean(bce_elem)
    intersection = jnp.sum(s * t)
    jaccard = (intersection + smooth) / (
        jnp.sum(s) + jnp.sum(t) - intersection + smooth
    )
    return alpha * bce + alpha * (1.0 - jaccard)


if __name__ == "__main__":
    key = jax.random.PRNGKey(0)
    k1, k2, k3, k4 = jax.random.split(key, 4)

    # Primary small NCHW example (fully aligned, unmasked fast path).
    x = jax.random.normal(k1, (2, 4, 16, 16), dtype=jnp.float32)
    tgt = (jax.random.uniform(k2, (2, 4, 16, 16)) > 0.5).astype(jnp.float32)
    loss = jax.block_until_ready(jaccard_loss_bce(x, tgt))
    ref = jaccard_loss_bce_ref(x, tgt)
    assert jnp.allclose(loss, ref, rtol=1e-5, atol=1e-5), (loss, ref)

    # Unaligned numel: remainder folded in the epilogue, no pad copy.
    x2 = jax.random.normal(k3, (2, 3, 17, 13), dtype=jnp.float32)
    t2 = (jax.random.uniform(k4, (2, 3, 17, 13)) > 0.5).astype(jnp.float32)
    loss2 = jax.block_until_ready(jaccard_loss_bce(x2, t2))
    ref2 = jaccard_loss_bce_ref(x2, t2)
    assert jnp.allclose(loss2, ref2, rtol=1e-5, atol=1e-5), (loss2, ref2)

    # Forced small tile so the ragged-grid masked-tail path is exercised.
    x3 = jax.random.normal(k1, (2, 3, 16, 32), dtype=jnp.float32)   # 3072 elems
    t3 = (jax.random.uniform(k2, (2, 3, 16, 32)) > 0.5).astype(jnp.float32)
    loss3 = jax.block_until_ready(jaccard_loss_bce(x3, t3, tile_rows=16))
    ref3 = jaccard_loss_bce_ref(x3, t3)
    assert jnp.allclose(loss3, ref3, rtol=1e-5, atol=1e-5), (loss3, ref3)

    print("KERNEL_OK")
</pallas_src>

<mosaic_0001>
module attributes {stable_mosaic.version = 11 : i64} {
  func.func @_jaccard_bce_kernel(%arg0: i32, %arg1: memref<16x128xf32, #tpu.memory_space<vmem>>, %arg2: memref<16x128xf32, #tpu.memory_space<vmem>>, %arg3: memref<1x4x8x128xf32, #tpu.memory_space<vmem>>) attributes {dimension_semantics = [#tpu.dimension_semantics<parallel>], iteration_bounds = array<i64: 1>, scalar_prefetch = 0 : i64, scratch_operands = 0 : i64, tpu.core_type = #tpu.core_type<tc>, window_params = [{transform_indices = @transform_0, window_bounds = array<i64: 16, 128>}, {transform_indices = @transform_1, window_bounds = array<i64: 16, 128>}, {transform_indices = @transform_2, window_bounds = array<i64: 1, 4, 8, 128>}]} {
    %c0 = arith.constant 0 : index
    %c0_0 = arith.constant 0 : index
    %0 = vector.load %arg1[%c0, %c0_0] : memref<16x128xf32, #tpu.memory_space<vmem>>, vector<16x128xf32>
    %c0_1 = arith.constant 0 : index
    %c0_2 = arith.constant 0 : index
    %1 = vector.load %arg2[%c0_1, %c0_2] : memref<16x128xf32, #tpu.memory_space<vmem>>, vector<16x128xf32>
    %cst = arith.constant 5.000000e-01 : f32
    %2 = vector.broadcast %cst : f32 to vector<16x128xf32>
    %3 = arith.mulf %2, %0 : vector<16x128xf32>
    %4 = math.tanh %3 : vector<16x128xf32>
    %cst_3 = arith.constant 5.000000e-01 : f32
    %5 = vector.broadcast %cst_3 : f32 to vector<16x128xf32>
    %6 = arith.mulf %5, %4 : vector<16x128xf32>
    %cst_4 = arith.constant 5.000000e-01 : f32
    %7 = vector.broadcast %cst_4 : f32 to vector<16x128xf32>
    %8 = arith.addf %6, %7 : vector<16x128xf32>
    %9 = arith.mulf %8, %1 : vector<16x128xf32>
    %cst_5 = arith.constant 0.000000e+00 : f32
    %10 = vector.broadcast %cst_5 : f32 to vector<16x128xf32>
    %11 = arith.subf %10, %8 : vector<16x128xf32>
    %12 = math.exp %11 : vector<16x128xf32>
    %13 = math.log1p %12 : vector<16x128xf32>
    %14 = vector.shape_cast %8 : vector<16x128xf32> to vector<2x8x128xf32>
    %cst_6 = arith.constant dense<0.000000e+00> : vector<8x128xf32>
    %15 = vector.multi_reduction <add>, %14, %cst_6 [0] : vector<2x8x128xf32> to vector<8x128xf32>
    %c0_7 = arith.constant 0 : index
    %c0_8 = arith.constant 0 : index
    %c0_9 = arith.constant 0 : index
    %c0_10 = arith.constant 0 : index
    %16 = vector.load %arg3[%c0_7, %c0_8, %c0_9, %c0_10] : memref<1x4x8x128xf32, #tpu.memory_space<vmem>>, vector<1x1x8x128xf32>
    %17 = vector.shape_cast %16 : vector<1x1x8x128xf32> to vector<8x128xf32>
    %18 = vector.shape_cast %15 : vector<8x128xf32> to vector<1x1x8x128xf32>
    tpu.vector_store %arg3[%c0_7, %c0_8, %c0_9, %c0_10], %18 {strides = array<i32>} : memref<1x4x8x128xf32, #tpu.memory_space<vmem>>, vector<1x1x8x128xf32>,
    %19 = vector.shape_cast %1 : vector<16x128xf32> to vector<2x8x128xf32>
    %cst_11 = arith.constant dense<0.000000e+00> : vector<8x128xf32>
    %20 = vector.multi_reduction <add>, %19, %cst_11 [0] : vector<2x8x128xf32> to vector<8x128xf32>
    %c0_12 = arith.constant 0 : index
    %c1 = arith.constant 1 : index
    %c0_13 = arith.constant 0 : index
    %c0_14 = arith.constant 0 : index
    %21 = vector.load %arg3[%c0_12, %c1, %c0_13, %c0_14] : memref<1x4x8x128xf32, #tpu.memory_space<vmem>>, vector<1x1x8x128xf32>
    %22 = vector.shape_cast %21 : vector<1x1x8x128xf32> to vector<8x128xf32>
    %23 = vector.shape_cast %20 : vector<8x128xf32> to vector<1x1x8x128xf32>
    tpu.vector_store %arg3[%c0_12, %c1, %c0_13, %c0_14], %23 {strides = array<i32>} : memref<1x4x8x128xf32, #tpu.memory_space<vmem>>, vector<1x1x8x128xf32>,
    %24 = vector.shape_cast %9 : vector<16x128xf32> to vector<2x8x128xf32>
    %cst_15 = arith.constant dense<0.000000e+00> : vector<8x128xf32>
    %25 = vector.multi_reduction <add>, %24, %cst_15 [0] : vector<2x8x128xf32> to vector<8x128xf32>
    %c0_16 = arith.constant 0 : index
    %c2 = arith.constant 2 : index
    %c0_17 = arith.constant 0 : index
    %c0_18 = arith.constant 0 : index
    %26 = vector.load %arg3[%c0_16, %c2, %c0_17, %c0_18] : memref<1x4x8x128xf32, #tpu.memory_space<vmem>>, vector<1x1x8x128xf32>
    %27 = vector.shape_cast %26 : vector<1x1x8x128xf32> to vector<8x128xf32>
    %28 = vector.shape_cast %25 : vector<8x128xf32> to vector<1x1x8x128xf32>
    tpu.vector_store %arg3[%c0_16, %c2, %c0_17, %c0_18], %28 {strides = array<i32>} : memref<1x4x8x128xf32, #tpu.memory_space<vmem>>, vector<1x1x8x128xf32>,
    %29 = vector.shape_cast %13 : vector<16x128xf32> to vector<2x8x128xf32>
    %cst_19 = arith.constant dense<0.000000e+00> : vector<8x128xf32>
    %30 = vector.multi_reduction <add>, %29, %cst_19 [0] : vector<2x8x128xf32> to vector<8x128xf32>
    %c0_20 = arith.constant 0 : index
    %c3 = arith.constant 3 : index
    %c0_21 = arith.constant 0 : index
    %c0_22 = arith.constant 0 : index
    %31 = vector.load %arg3[%c0_20, %c3, %c0_21, %c0_22] : memref<1x4x8x128xf32, #tpu.memory_space<vmem>>, vector<1x1x8x128xf32>
    %32 = vector.shape_cast %31 : vector<1x1x8x128xf32> to vector<8x128xf32>
    %33 = vector.shape_cast %30 : vector<8x128xf32> to vector<1x1x8x128xf32>
    tpu.vector_store %arg3[%c0_20, %c3, %c0_21, %c0_22], %33 {strides = array<i32>} : memref<1x4x8x128xf32, #tpu.memory_space<vmem>>, vector<1x1x8x128xf32>,
    return
  }
  func.func @transform_0(%arg0: i32) -> (i32, i32) {
    %c0_i32 = arith.constant 0 : i32
    %c0_i32_0 = arith.constant 0 : i32
    return %arg0, %c0_i32 : i32, i32
  }
  func.func @transform_1(%arg0: i32) -> (i32, i32) {
    %c0_i32 = arith.constant 0 : i32
    %c0_i32_0 = arith.constant 0 : i32
    return %arg0, %c0_i32 : i32, i32
  }
  func.func @transform_2(%arg0: i32) -> (i32, i32, i32, i32) {
    %c0_i32 = arith.constant 0 : i32
    %c0_i32_0 = arith.constant 0 : i32
    %c0_i32_1 = arith.constant 0 : i32
    %c0_i32_2 = arith.constant 0 : i32
    return %arg0, %c0_i32, %c0_i32_0, %c0_i32_1 : i32, i32, i32, i32
  }
}

</mosaic_0001>

<llo_original>
// kernel: tpu_custom_call.1
$region0: #{tpu_custom_call.1}
  #allocation0 [shape = 'u32[]', space=smem, size = 0x4, offset = 0x4, fixed_abs, tag = 'smem constant byte address 0x4 - core index']
  #allocation1 [shape = 'u32[144,128]{1,0:T(1,128)}', space=vmem, size = 0x12000, scoped, tag = 'internal scratch']
  %s0 = inlined_call_operand.hbm [shape: f32[16,128], index: 0, kind: input, shape index: {}]
  %s1 = inlined_call_operand.hbm [shape: f32[16,128], index: 1, kind: input, shape index: {}]
  %s2 = inlined_call_operand.hbm [shape: f32[1,4,8,128], index: 2, kind: output, shape index: {}]
  %s3 = sld [smem:[#allocation0]]
  $region26: #{tpu_custom_call.1} parent=0
    _
  %s5 = ssub.s32 1, %s3
  %s6 = scalar_select 0, %s5, %s3
  $region1: #{tpu_custom_call.1} parent=0
    #allocation2 [shape = 'u8[8192]{0}', space=vmem, size = 0x2000, scoped, tag = 'input window, operand 0, single buffered']
    #allocation3 [shape = 's32[1]{0}', space=sflag, size = 0x4, scoped, tag = 'scoped memory for tpu_custom_call.1']
    #allocation4 [shape = 's32[1]{0}', space=sflag, size = 0x4, scoped, tag = 'scoped memory for tpu_custom_call.1']
    #allocation5 [shape = 'u8[8192]{0}', space=vmem, size = 0x2000, scoped, tag = 'input window, operand 1, single buffered']
    #allocation6 [shape = 's32[1]{0}', space=sflag, size = 0x4, scoped, tag = 'scoped memory for tpu_custom_call.1']
    #allocation7 [shape = 'u8[16384]{0}', space=vmem, size = 0x4000, scoped, tag = 'output window, operand 0, single buffered']
    %7 = vsyncpa [#allocation3], 0
    %8 = vsyncpa [#allocation6], 0
    %9 = vsyncpa [#allocation4], 0
    // Predicated region
    $region2: #{tpu_custom_call.1} parent=1 // pred_check
      _
    $region3: #{tpu_custom_call.1} parent=1 // pred_check_branch
      %11 = sbr.rel (0) target = $region5
    $region4: #{tpu_custom_call.1} parent=1 // pred_region
      %s13 = ssub.s32 256, 256
      %14 = vsyncadd [#allocation3], %s13
      %s15 = sshll.u32 [#allocation2], 4
      %s16 = int_to_ptr.vmem [resolvable:$true] %s15
      %21 = dma.hbm_to_vmem [thread:$0]  %s0, 256, %s16, [#allocation3], 128, 128, 8
    $region5: #{tpu_custom_call.1} parent=1 // pred_fallthru
      _
    // Predicated region
    $region6: #{tpu_custom_call.1} parent=1 // pred_check
      _
    $region7: #{tpu_custom_call.1} parent=1 // pred_check_branch
      %23 = sbr.rel (0) target = $region9
    $region8: #{tpu_custom_call.1} parent=1 // pred_region
      %s25 = ssub.s32 256, 256
      %26 = vsyncadd [#allocation6], %s25
      %s27 = sshll.u32 [#allocation5], 4
      %s28 = int_to_ptr.vmem [resolvable:$true] %s27
      %33 = dma.hbm_to_vmem [thread:$0]  %s1, 256, %s28, [#allocation6], 128, 128, 8
    $region9: #{tpu_custom_call.1} parent=1 // pred_fallthru
      _
    // Predicated region
    $region10: #{tpu_custom_call.1} parent=1 // pred_check
      _
    $region11: #{tpu_custom_call.1} parent=1 // pred_check_branch
      %35 = sbr.rel (0) target = $region13
    $region12: #{tpu_custom_call.1} parent=1 // pred_region
      %36 = dma.done [#allocation3], 256
    $region13: #{tpu_custom_call.1} parent=1 // pred_fallthru
      _
    // Predicated region
    $region14: #{tpu_custom_call.1} parent=1 // pred_check
      _
    $region15: #{tpu_custom_call.1} parent=1 // pred_check_branch
      %38 = sbr.rel (0) target = $region17
    $region16: #{tpu_custom_call.1} parent=1 // pred_region
      %39 = dma.done [#allocation6], 256
    $region17: #{tpu_custom_call.1} parent=1 // pred_fallthru
      _
    %v40 = vld [vmem:[#allocation2] sm:$0xff]
    %v41 = vld [vmem:[#allocation2 + $0x8] sm:$0xff]
    %v42 = vld [vmem:[#allocation5] sm:$0xff]
    %v43 = vld [vmem:[#allocation5 + $0x8] sm:$0xff]
    %v44 = vmul.f32 %v40, 0.5
    %v45 = vmul.f32 %v41, 0.5
    %v46 = vtanh.pop %v44
    %v47 = vtanh.pop %v45
    %v48 = vmul.f32 %v46, 0.5
    %v49 = vmul.f32 %v47, 0.5
    %v50 = vadd.f32 %v48, 0.5
    %v51 = vadd.f32 %v49, 0.5
    %v52 = vmul.f32 %v50, %v42
    %v53 = vmul.f32 %v51, %v43
    %v54 = vsub.f32 0.0, %v50
    %v55 = vsub.f32 0.0, %v51
    %v56 = vmul.f32 %v54, 1.442695
    %v57 = vpow.pop %v56
    %v58 = vmul.f32 %v55, 1.442695
    %v59 = vpow.pop %v58
    %v60 = vadd.f32 %v57, 1.0
    %v61 = vlog2.pop %v60
    %v62 = vmul.f32 %v61, 0.6931472
    %v63 = vmul.f32 -0.5, %v57
    %v64 = vadd.f32 %v63, 1.0
    %v65 = vmul.f32 %v64, %v57
    %v66 = vand.u32 2147483647, %v57
    %vm67 = vcmp.lt.f32.partialorder %v66, 0.0004427343
    %v68 = vsel %vm67, %v65, %v62
    %v69 = vadd.f32 %v59, 1.0
    %v70 = vlog2.pop %v69
    %v71 = vmul.f32 %v70, 0.6931472
    %v72 = vmul.f32 -0.5, %v59
    %v73 = vadd.f32 %v72, 1.0
    %v74 = vmul.f32 %v73, %v59
    %v75 = vand.u32 2147483647, %v59
    %vm76 = vcmp.lt.f32.partialorder %v75, 0.0004427343
    %v77 = vsel %vm76, %v74, %v71
    %v78 = vadd.f32 %v50, %v51
    %79 = vst [vmem:[#allocation7] sm:$0xff] %v78
    %v80 = vadd.f32 %v42, %v43
    %s81 = scalar_lea.vmem [#allocation7], 8
    %82 = vst [vmem:[%s81] sm:$0xff] %v80
    %v83 = vadd.f32 %v52, %v53
    %s84 = scalar_lea.vmem [#allocation7], 16
    %85 = vst [vmem:[%s84] sm:$0xff] %v83
    %v86 = vadd.f32 %v68, %v77
    %s87 = scalar_lea.vmem [#allocation7], 24
    %88 = vst [vmem:[%s87] sm:$0xff] %v86
    // Predicated region
    $region18: #{tpu_custom_call.1} parent=1 // pred_check
      _
    $region19: #{tpu_custom_call.1} parent=1 // pred_check_branch
      %90 = sbr.rel (0) target = $region21
    $region20: #{tpu_custom_call.1} parent=1 // pred_region
      %s92 = ssub.s32 512, 512
      %93 = vsyncadd [#allocation4], %s92
      %s94 = sshll.u32 [#allocation7], 4
      %s95 = int_to_ptr.vmem [resolvable:$true] %s94
      %100 = dma.vmem_to_hbm [thread:$0]  %s95, 512, %s2, [#allocation4], 128, 128, 8
    $region21: #{tpu_custom_call.1} parent=1 // pred_fallthru
      _
    // Predicated region
    $region22: #{tpu_custom_call.1} parent=1 // pred_check
      _
    $region23: #{tpu_custom_call.1} parent=1 // pred_check_branch
      %102 = sbr.rel (0) target = $region25
    $region24: #{tpu_custom_call.1} parent=1 // pred_region
      %103 = dma.done [#allocation4], 512
    $region25: #{tpu_custom_call.1} parent=1 // pred_fallthru
      _
    %104 = vsyncpa [#allocation3], 1
    %105 = vsyncpa [#allocation6], 1
    %106 = vsyncpa [#allocation4], 1

</llo_original>
